<compile_context>
chip_gen: v5e
topology: v5e:2x2
jax: 0.10.0
libtpu: 0.0.40
codegen_flags: <defaults>
</compile_context>

<pallas_src>
import functools
import numpy as np
import jax
import jax.numpy as jnp
from jax.experimental import pallas as pl
from jax.experimental.pallas import tpu as pltpu

N_HARMONIC = 10        # n_harmonic_functions in PoseEmbedding.__init__
OMEGA_0 = 1.0
APPEND_INPUT = True


def _round_up(a, b):
    return (a + b - 1) // b * b


def harmonic_kernel(x_ref, fm_ref, phase_ref, o_ref):
    """One (TM, D) row tile -> (TM, D*(2N+1)) harmonic embedding.

    x_ref:     (TM, D)      f32  row tile of flattened pose encodings
    fm_ref:    (D, 2*D*N)   f32  constant: row d carries f_1..f_N on the output lanes
                                 belonging to pose-dim d (sin half and cos half), 0 elsewhere
    phase_ref: (1, 2*D*N)   f32  constant: 0 on the sin half, pi/2 on the cos half
    o_ref:     (TM, D*(2N+1))    [ sin block | cos block | x ]
    """
    x = x_ref[...]                       # (TM, D)
    fm = fm_ref[...]                     # (D, W)
    _, d_dim = x.shape
    w = fm.shape[-1]                     # W = 2*D*N

    # arg[:, c] = x[:, dim(c)] * f_{j(c)} + phase(c), built lane-dense over all W lanes.
    # Exact: every lane gets exactly one nonzero (power-of-two) contribution.
    acc = phase_ref[...]                 # (1, W); broadcasts up on the first add
    for d in range(d_dim):               # D is small & static -> unrolled VPU FMA chain
        acc = acc + x[:, d:d + 1] * fm[d:d + 1, :]

    emb = jnp.sin(acc)                   # (TM, W): sin half | cos half (sin(x + pi/2))
    o_ref[:, :w] = emb.astype(o_ref.dtype)   # single wide lane-dense store from lane 0
    o_ref[:, w:] = x.astype(o_ref.dtype)     # append_input tail


@functools.partial(
    jax.jit, static_argnames=("n_harmonic", "omega_0", "block_rows", "out_dtype"))
def pose_embedding(pose_encoding, n_harmonic=N_HARMONIC, omega_0=OMEGA_0,
                   block_rows=1024, out_dtype=jnp.float32):
    """Flatten leading dims, run the row-tiled Pallas kernel, reshape back."""
    lead = pose_encoding.shape[:-1]
    D = pose_encoding.shape[-1]
    N = n_harmonic
    W = 2 * D * N
    out_dim = D * (2 * N + int(APPEND_INPUT))

    x2 = pose_encoding.reshape(-1, D).astype(jnp.float32)
    M = x2.shape[0]

    # Row tiling: TM multiple of 8; pad rows so the grid divides evenly.
    TM = int(min(block_rows, _round_up(max(M, 1), 8)))
    M_pad = _round_up(max(M, 1), TM)
    if M_pad != M:
        x2 = jnp.pad(x2, ((0, M_pad - M), (0, 0)))

    # Compile-time constant tables (deterministic "parameters"; fetched once since their
    # block index never changes across grid steps).
    freqs = (2.0 ** np.arange(N, dtype=np.float64)) * omega_0   # logspace, exact
    fm_np = np.zeros((D, W), dtype=np.float32)
    for d in range(D):
        fm_np[d, d * N:(d + 1) * N] = freqs
        fm_np[d, D * N + d * N:D * N + (d + 1) * N] = freqs
    phase_np = np.zeros((1, W), dtype=np.float32)
    phase_np[:, D * N:] = np.float32(0.5 * np.pi)

    grid = (M_pad // TM,)
    out = pl.pallas_call(
        harmonic_kernel,
        out_shape=jax.ShapeDtypeStruct((M_pad, out_dim), out_dtype),
        grid=grid,
        in_specs=[
            pl.BlockSpec((TM, D), lambda i: (i, 0)),    # pipelined row tile
            pl.BlockSpec((D, W), lambda i: (0, 0)),     # constant freq-mask (resident)
            pl.BlockSpec((1, W), lambda i: (0, 0)),     # constant phase row (resident)
        ],
        out_specs=pl.BlockSpec((TM, out_dim), lambda i: (i, 0)),
        compiler_params=pltpu.CompilerParams(
            dimension_semantics=("parallel",)),          # megacore-shardable on v7x
        cost_estimate=pl.CostEstimate(
            flops=int(2 * M_pad * W * D),
            transcendentals=int(M_pad * W),
            bytes_accessed=int(4 * (M_pad * (D + out_dim) + D * W + W))),
    )(x2, jnp.asarray(fm_np), jnp.asarray(phase_np))

    if M_pad != M:
        out = out[:M]
    return out.reshape(*lead, out_dim)


def pose_embedding_ref(pose_encoding, n_harmonic=N_HARMONIC, omega_0=OMEGA_0):
    """Pure-JAX reference mirroring torch HarmonicEmbedding exactly (cos = sin(x + pi/2))."""
    x = pose_encoding.astype(jnp.float32)
    freqs = (2.0 ** jnp.arange(n_harmonic, dtype=jnp.float32)) * jnp.float32(omega_0)
    zero_half_pi = jnp.array([0.0, 0.5 * np.pi], dtype=jnp.float32)
    embed = x[..., None] * freqs                                     # (..., D, N)
    embed = embed[..., None, :, :] + zero_half_pi[..., None, None]   # (..., 2, D, N)
    embed = jnp.sin(embed)
    embed = embed.reshape(*x.shape[:-1], -1)                         # (..., 2*D*N)
    return jnp.concatenate([embed, x], axis=-1)


if __name__ == "__main__":
    k1, k2 = jax.random.split(jax.random.PRNGKey(0))

    # Small shape consistent with the module: pose_encoding (batch, seq, target_dim).
    B, S, TARGET_DIM = 2, 8, 8
    pose_encoding = jax.random.normal(k1, (B, S, TARGET_DIM), dtype=jnp.float32)

    out = jax.block_until_ready(pose_embedding(pose_encoding))
    ref = pose_embedding_ref(pose_encoding)
    expected_out_dim = TARGET_DIM * (2 * N_HARMONIC + int(APPEND_INPUT))
    assert out.shape == (B, S, expected_out_dim), out.shape
    np.testing.assert_allclose(np.asarray(out), np.asarray(ref), rtol=1e-5, atol=1e-5)

    # Exercise row padding + multi-tile grid path (M=150 rows, 64-row tiles -> grid=3).
    pe2 = jax.random.normal(k2, (3, 50, TARGET_DIM), dtype=jnp.float32)
    out2 = jax.block_until_ready(pose_embedding(pe2, block_rows=64))
    ref2 = pose_embedding_ref(pe2)
    assert out2.shape == (3, 50, expected_out_dim), out2.shape
    np.testing.assert_allclose(np.asarray(out2), np.asarray(ref2), rtol=1e-5, atol=1e-5)

    print("KERNEL_OK")
</pallas_src>

<mosaic_0001>
module attributes {stable_mosaic.version = 11 : i64} {
  func.func @harmonic_kernel(%arg0: i32, %arg1: memref<16x8xf32, #tpu.memory_space<vmem>>, %arg2: memref<8x160xf32, #tpu.memory_space<vmem>>, %arg3: memref<1x160xf32, #tpu.memory_space<vmem>>, %arg4: memref<16x168xf32, #tpu.memory_space<vmem>>) attributes {dimension_semantics = [#tpu.dimension_semantics<parallel>], iteration_bounds = array<i64: 1>, scalar_prefetch = 0 : i64, scratch_operands = 0 : i64, tpu.core_type = #tpu.core_type<tc>, window_params = [{transform_indices = @transform_0, window_bounds = array<i64: 16, 8>}, {pipeline_mode = #tpu.pipeline_mode<synchronous>, transform_indices = @transform_1, window_bounds = array<i64: 8, 160>}, {pipeline_mode = #tpu.pipeline_mode<synchronous>, transform_indices = @transform_2, window_bounds = array<i64: 1, 160>}, {transform_indices = @transform_3, window_bounds = array<i64: 16, 168>}]} {
    %c0 = arith.constant 0 : index
    %c0_0 = arith.constant 0 : index
    %0 = vector.load %arg1[%c0, %c0_0] : memref<16x8xf32, #tpu.memory_space<vmem>>, vector<16x8xf32>
    %c0_1 = arith.constant 0 : index
    %c0_2 = arith.constant 0 : index
    %1 = vector.load %arg2[%c0_1, %c0_2] : memref<8x160xf32, #tpu.memory_space<vmem>>, vector<8x160xf32>
    %c0_3 = arith.constant 0 : index
    %c0_4 = arith.constant 0 : index
    %2 = vector.load %arg3[%c0_3, %c0_4] : memref<1x160xf32, #tpu.memory_space<vmem>>, vector<1x160xf32>
    %3 = vector.extract_strided_slice %0 {offsets = [0, 0], sizes = [16, 1], strides = [1, 1]} : vector<16x8xf32> to vector<16x1xf32>
    %4 = vector.extract_strided_slice %1 {offsets = [0, 0], sizes = [1, 160], strides = [1, 1]} : vector<8x160xf32> to vector<1x160xf32>
    %5 = vector.broadcast %3 : vector<16x1xf32> to vector<16x160xf32>
    %6 = vector.broadcast %4 : vector<1x160xf32> to vector<16x160xf32>
    %7 = arith.mulf %5, %6 : vector<16x160xf32>
    %8 = vector.broadcast %2 : vector<1x160xf32> to vector<16x160xf32>
    %9 = arith.addf %8, %7 : vector<16x160xf32>
    %10 = vector.extract_strided_slice %0 {offsets = [0, 1], sizes = [16, 1], strides = [1, 1]} : vector<16x8xf32> to vector<16x1xf32>
    %11 = vector.extract_strided_slice %1 {offsets = [1, 0], sizes = [1, 160], strides = [1, 1]} : vector<8x160xf32> to vector<1x160xf32>
    %12 = vector.broadcast %10 : vector<16x1xf32> to vector<16x160xf32>
    %13 = vector.broadcast %11 : vector<1x160xf32> to vector<16x160xf32>
    %14 = arith.mulf %12, %13 : vector<16x160xf32>
    %15 = arith.addf %9, %14 : vector<16x160xf32>
    %16 = vector.extract_strided_slice %0 {offsets = [0, 2], sizes = [16, 1], strides = [1, 1]} : vector<16x8xf32> to vector<16x1xf32>
    %17 = vector.extract_strided_slice %1 {offsets = [2, 0], sizes = [1, 160], strides = [1, 1]} : vector<8x160xf32> to vector<1x160xf32>
    %18 = vector.broadcast %16 : vector<16x1xf32> to vector<16x160xf32>
    %19 = vector.broadcast %17 : vector<1x160xf32> to vector<16x160xf32>
    %20 = arith.mulf %18, %19 : vector<16x160xf32>
    %21 = arith.addf %15, %20 : vector<16x160xf32>
    %22 = vector.extract_strided_slice %0 {offsets = [0, 3], sizes = [16, 1], strides = [1, 1]} : vector<16x8xf32> to vector<16x1xf32>
    %23 = vector.extract_strided_slice %1 {offsets = [3, 0], sizes = [1, 160], strides = [1, 1]} : vector<8x160xf32> to vector<1x160xf32>
    %24 = vector.broadcast %22 : vector<16x1xf32> to vector<16x160xf32>
    %25 = vector.broadcast %23 : vector<1x160xf32> to vector<16x160xf32>
    %26 = arith.mulf %24, %25 : vector<16x160xf32>
    %27 = arith.addf %21, %26 : vector<16x160xf32>
    %28 = vector.extract_strided_slice %0 {offsets = [0, 4], sizes = [16, 1], strides = [1, 1]} : vector<16x8xf32> to vector<16x1xf32>
    %29 = vector.extract_strided_slice %1 {offsets = [4, 0], sizes = [1, 160], strides = [1, 1]} : vector<8x160xf32> to vector<1x160xf32>
    %30 = vector.broadcast %28 : vector<16x1xf32> to vector<16x160xf32>
    %31 = vector.broadcast %29 : vector<1x160xf32> to vector<16x160xf32>
    %32 = arith.mulf %30, %31 : vector<16x160xf32>
    %33 = arith.addf %27, %32 : vector<16x160xf32>
    %34 = vector.extract_strided_slice %0 {offsets = [0, 5], sizes = [16, 1], strides = [1, 1]} : vector<16x8xf32> to vector<16x1xf32>
    %35 = vector.extract_strided_slice %1 {offsets = [5, 0], sizes = [1, 160], strides = [1, 1]} : vector<8x160xf32> to vector<1x160xf32>
    %36 = vector.broadcast %34 : vector<16x1xf32> to vector<16x160xf32>
    %37 = vector.broadcast %35 : vector<1x160xf32> to vector<16x160xf32>
    %38 = arith.mulf %36, %37 : vector<16x160xf32>
    %39 = arith.addf %33, %38 : vector<16x160xf32>
    %40 = vector.extract_strided_slice %0 {offsets = [0, 6], sizes = [16, 1], strides = [1, 1]} : vector<16x8xf32> to vector<16x1xf32>
    %41 = vector.extract_strided_slice %1 {offsets = [6, 0], sizes = [1, 160], strides = [1, 1]} : vector<8x160xf32> to vector<1x160xf32>
    %42 = vector.broadcast %40 : vector<16x1xf32> to vector<16x160xf32>
    %43 = vector.broadcast %41 : vector<1x160xf32> to vector<16x160xf32>
    %44 = arith.mulf %42, %43 : vector<16x160xf32>
    %45 = arith.addf %39, %44 : vector<16x160xf32>
    %46 = vector.extract_strided_slice %0 {offsets = [0, 7], sizes = [16, 1], strides = [1, 1]} : vector<16x8xf32> to vector<16x1xf32>
    %47 = vector.extract_strided_slice %1 {offsets = [7, 0], sizes = [1, 160], strides = [1, 1]} : vector<8x160xf32> to vector<1x160xf32>
    %48 = vector.broadcast %46 : vector<16x1xf32> to vector<16x160xf32>
    %49 = vector.broadcast %47 : vector<1x160xf32> to vector<16x160xf32>
    %50 = arith.mulf %48, %49 : vector<16x160xf32>
    %51 = arith.addf %45, %50 : vector<16x160xf32>
    %52 = math.sin %51 : vector<16x160xf32>
    %c0_5 = arith.constant 0 : index
    %c0_6 = arith.constant 0 : index
    %53 = vector.load %arg4[%c0_5, %c0_6] : memref<16x168xf32, #tpu.memory_space<vmem>>, vector<16x160xf32>
    tpu.vector_store %arg4[%c0_5, %c0_6], %52 {strides = array<i32>} : memref<16x168xf32, #tpu.memory_space<vmem>>, vector<16x160xf32>,
    %c0_7 = arith.constant 0 : index
    %c160 = arith.constant 160 : index
    %54 = vector.load %arg4[%c0_7, %c160] : memref<16x168xf32, #tpu.memory_space<vmem>>, vector<16x8xf32>
    tpu.vector_store %arg4[%c0_7, %c160], %0 {strides = array<i32>} : memref<16x168xf32, #tpu.memory_space<vmem>>, vector<16x8xf32>,
    return
  }
  func.func @transform_0(%arg0: i32) -> (i32, i32) {
    %c0_i32 = arith.constant 0 : i32
    %c0_i32_0 = arith.constant 0 : i32
    return %arg0, %c0_i32 : i32, i32
  }
  func.func @transform_1(%arg0: i32) -> (i32, i32) {
    %c0_i32 = arith.constant 0 : i32
    %c0_i32_0 = arith.constant 0 : i32
    %c0_i32_1 = arith.constant 0 : i32
    return %c0_i32, %c0_i32_0 : i32, i32
  }
  func.func @transform_2(%arg0: i32) -> (i32, i32) {
    %c0_i32 = arith.constant 0 : i32
    %c0_i32_0 = arith.constant 0 : i32
    %c0_i32_1 = arith.constant 0 : i32
    return %c0_i32, %c0_i32_0 : i32, i32
  }
  func.func @transform_3(%arg0: i32) -> (i32, i32) {
    %c0_i32 = arith.constant 0 : i32
    %c0_i32_0 = arith.constant 0 : i32
    return %arg0, %c0_i32 : i32, i32
  }
}

</mosaic_0001>

<llo_original>
// kernel: pose_embedding.1
$region0: #{pose_embedding.1}
  #allocation0 [shape = 'u32[]', space=smem, size = 0x4, offset = 0x4, fixed_abs, tag = 'smem constant byte address 0x4 - core index']
  #allocation1 [shape = 'u32[72,128]{1,0:T(1,128)}', space=vmem, size = 0x9000, scoped, tag = 'internal scratch']
  %s0 = inlined_call_operand.hbm [shape: f32[16,8], index: 0, kind: input, shape index: {}]
  %s1 = inlined_call_operand.hbm [shape: f32[8,160], index: 1, kind: input, shape index: {}]
  %s2 = inlined_call_operand.vmem [shape: f32[1,160], index: 2, kind: input, shape index: {}]
  %s3 = inlined_call_operand.hbm [shape: f32[16,168], index: 3, kind: output, shape index: {}]
  %s4 = sld [smem:[#allocation0]]
  $region30: #{pose_embedding.1} parent=0
    _
  %s6 = ssub.s32 1, %s4
  %s7 = scalar_select 0, %s6, %s4
  $region1: #{pose_embedding.1} parent=0
    #allocation2 [shape = 'u8[8192]{0}', space=vmem, size = 0x2000, scoped, tag = 'input window, operand 0, single buffered']
    #allocation3 [shape = 's32[1]{0}', space=sflag, size = 0x4, scoped, tag = 'scoped memory for pose_embedding.1']
    #allocation4 [shape = 's32[1]{0}', space=sflag, size = 0x4, scoped, tag = 'scoped memory for pose_embedding.1']
    #allocation5 [shape = 'u8[8192]{0}', space=vmem, size = 0x2000, scoped, tag = 'input window, operand 1, single buffered']
    #allocation6 [shape = 's32[1]{0}', space=sflag, size = 0x4, scoped, tag = 'scoped memory for pose_embedding.1']
    #allocation7 [shape = 'u8[16384]{0}', space=vmem, size = 0x4000, scoped, tag = 'output window, operand 0, single buffered']
    %8 = vsyncpa [#allocation3], 0
    %9 = vsyncpa [#allocation6], 0
    %10 = vsyncpa [#allocation4], 0
    // Predicated region
    $region2: #{pose_embedding.1} parent=1 // pred_check
      _
    $region3: #{pose_embedding.1} parent=1 // pred_check_branch
      %12 = sbr.rel (0) target = $region5
    $region4: #{pose_embedding.1} parent=1 // pred_region
      %14 = vsyncadd [#allocation3], 0
      %s15 = sshll.u32 %s0, 4
      %s16 = int_to_ptr.hbm [resolvable:$true] %s15
      %s17 = sshll.u32 [#allocation2], 4
      %s18 = int_to_ptr.vmem [resolvable:$true] %s17
      %23 = dma.hbm_to_vmem [thread:$0]  %s16, 256, %s18, [#allocation3], 128, 128, 8
    $region5: #{pose_embedding.1} parent=1 // pred_fallthru
      _
    // Predicated region
    $region6: #{pose_embedding.1} parent=1 // pred_check
      _
    $region7: #{pose_embedding.1} parent=1 // pred_check_branch
      %25 = sbr.rel (0) target = $region9
    $region8: #{pose_embedding.1} parent=1 // pred_region
      %27 = vsyncadd [#allocation6], 0
      %s29 = sshll.u32 %s1, 4
      %s30 = int_to_ptr.hbm [resolvable:$true] %s29
      %s31 = sshll.u32 [#allocation5], 4
      %s32 = int_to_ptr.vmem [resolvable:$true] %s31
      %34 = dma.hbm_to_vmem [thread:$0]  %s30, 256, %s32, [#allocation6]
    $region9: #{pose_embedding.1} parent=1 // pred_fallthru
      _
    // Predicated region
    $region10: #{pose_embedding.1} parent=1 // pred_check
      _
    $region11: #{pose_embedding.1} parent=1 // pred_check_branch
      %36 = sbr.rel (0) target = $region13
    $region12: #{pose_embedding.1} parent=1 // pred_region
      _
    $region13: #{pose_embedding.1} parent=1 // pred_fallthru
      _
    // Predicated region
    $region14: #{pose_embedding.1} parent=1 // pred_check
      _
    $region15: #{pose_embedding.1} parent=1 // pred_check_branch
      %38 = sbr.rel (0) target = $region17
    $region16: #{pose_embedding.1} parent=1 // pred_region
      %40 = dma.done [#allocation3], 256
    $region17: #{pose_embedding.1} parent=1 // pred_fallthru
      _
    // Predicated region
    $region18: #{pose_embedding.1} parent=1 // pred_check
      _
    $region19: #{pose_embedding.1} parent=1 // pred_check_branch
      %42 = sbr.rel (0) target = $region21
    $region20: #{pose_embedding.1} parent=1 // pred_region
      %44 = dma.done [#allocation6], 256
    $region21: #{pose_embedding.1} parent=1 // pred_fallthru
      _
    %v45 = vld [vmem:[#allocation2] sm:$0xff]
    %v46 = vld [vmem:[#allocation2 + $0x8] sm:$0xff]
    %v47 = vld [vmem:[#allocation5] sm:$0xff]
    %v48 = vld [vmem:[#allocation5 + $0x8] sm:$0xff]
    %v49 = vld [vmem:[%s2] sm:$0x3]
    %51 = vset.pattern.permute.xlu0 0
    %52 = vperm.xlu0 %51, %v45
    %v53 = vpop.permute.xlu0 %52
    %56 = vset.pattern.permute.xlu0 0
    %57 = vperm.xlu0 %56, %v46
    %v58 = vpop.permute.xlu0 %57
    %v60 = vperm.slane %v47, 0
    %v61 = vperm.slane %v48, 0
    %v62 = vmul.f32 %v53, %v60
    %v63 = vmul.f32 %v53, %v61
    %v64 = vmul.f32 %v58, %v60
    %v65 = vmul.f32 %v58, %v61
    %v67 = vperm.slane %v49, 0
    %v68 = vperm.slane %v49, 1
    %v71 = vadd.f32 %v67, %v62
    %v72 = vadd.f32 %v68, %v63
    %v73 = vadd.f32 %v67, %v64
    %v74 = vadd.f32 %v68, %v65
    %75 = vset.pattern.permute.xlu0 1
    %76 = vperm.xlu0 %75, %v45
    %v77 = vpop.permute.xlu0 %76
    %79 = vset.pattern.permute.xlu0 1
    %80 = vperm.xlu0 %79, %v46
    %v81 = vpop.permute.xlu0 %80
    %v83 = vperm.slane %v47, 1
    %v84 = vperm.slane %v48, 1
    %v85 = vmul.f32 %v77, %v83
    %v86 = vmul.f32 %v77, %v84
    %v87 = vmul.f32 %v81, %v83
    %v88 = vmul.f32 %v81, %v84
    %v89 = vadd.f32 %v71, %v85
    %v90 = vadd.f32 %v72, %v86
    %v91 = vadd.f32 %v73, %v87
    %v92 = vadd.f32 %v74, %v88
    %93 = vset.pattern.permute.xlu0 2
    %94 = vperm.xlu0 %93, %v45
    %v95 = vpop.permute.xlu0 %94
    %97 = vset.pattern.permute.xlu0 2
    %98 = vperm.xlu0 %97, %v46
    %v99 = vpop.permute.xlu0 %98
    %v101 = vperm.slane %v47, 2
    %v102 = vperm.slane %v48, 2
    %v103 = vmul.f32 %v95, %v101
    %v104 = vmul.f32 %v95, %v102
    %v105 = vmul.f32 %v99, %v101
    %v106 = vmul.f32 %v99, %v102
    %v107 = vadd.f32 %v89, %v103
    %v108 = vadd.f32 %v90, %v104
    %v109 = vadd.f32 %v91, %v105
    %v110 = vadd.f32 %v92, %v106
    %111 = vset.pattern.permute.xlu0 3
    %112 = vperm.xlu0 %111, %v45
    %v113 = vpop.permute.xlu0 %112
    %115 = vset.pattern.permute.xlu0 3
    %116 = vperm.xlu0 %115, %v46
    %v117 = vpop.permute.xlu0 %116
    %v119 = vperm.slane %v47, 3
    %v120 = vperm.slane %v48, 3
    %v121 = vmul.f32 %v113, %v119
    %v122 = vmul.f32 %v113, %v120
    %v123 = vmul.f32 %v117, %v119
    %v124 = vmul.f32 %v117, %v120
    %v125 = vadd.f32 %v107, %v121
    %v126 = vadd.f32 %v108, %v122
    %v127 = vadd.f32 %v109, %v123
    %v128 = vadd.f32 %v110, %v124
    %129 = vset.pattern.permute.xlu0 4
    %130 = vperm.xlu0 %129, %v45
    %v131 = vpop.permute.xlu0 %130
    %133 = vset.pattern.permute.xlu0 4
    %134 = vperm.xlu0 %133, %v46
    %v135 = vpop.permute.xlu0 %134
    %v137 = vperm.slane %v47, 4
    %v138 = vperm.slane %v48, 4
    %v139 = vmul.f32 %v131, %v137
    %v140 = vmul.f32 %v131, %v138
    %v141 = vmul.f32 %v135, %v137
    %v142 = vmul.f32 %v135, %v138
    %v143 = vadd.f32 %v125, %v139
    %v144 = vadd.f32 %v126, %v140
    %v145 = vadd.f32 %v127, %v141
    %v146 = vadd.f32 %v128, %v142
    %147 = vset.pattern.permute.xlu0 5
    %148 = vperm.xlu0 %147, %v45
    %v149 = vpop.permute.xlu0 %148
    %151 = vset.pattern.permute.xlu0 5
    %152 = vperm.xlu0 %151, %v46
    %v153 = vpop.permute.xlu0 %152
    %v155 = vperm.slane %v47, 5
    %v156 = vperm.slane %v48, 5
    %v157 = vmul.f32 %v149, %v155
    %v158 = vmul.f32 %v149, %v156
    %v159 = vmul.f32 %v153, %v155
    %v160 = vmul.f32 %v153, %v156
    %v161 = vadd.f32 %v143, %v157
    %v162 = vadd.f32 %v144, %v158
    %v163 = vadd.f32 %v145, %v159
    %v164 = vadd.f32 %v146, %v160
    %165 = vset.pattern.permute.xlu0 6
    %166 = vperm.xlu0 %165, %v45
    %v167 = vpop.permute.xlu0 %166
    %169 = vset.pattern.permute.xlu0 6
    %170 = vperm.xlu0 %169, %v46
    %v171 = vpop.permute.xlu0 %170
    %v173 = vperm.slane %v47, 6
    %v174 = vperm.slane %v48, 6
    %v175 = vmul.f32 %v167, %v173
    %v176 = vmul.f32 %v167, %v174
    %v177 = vmul.f32 %v171, %v173
    %v178 = vmul.f32 %v171, %v174
    %v179 = vadd.f32 %v161, %v175
    %v180 = vadd.f32 %v162, %v176
    %v181 = vadd.f32 %v163, %v177
    %v182 = vadd.f32 %v164, %v178
    %183 = vset.pattern.permute.xlu0 7
    %184 = vperm.xlu0 %183, %v45
    %v185 = vpop.permute.xlu0 %184
    %187 = vset.pattern.permute.xlu0 7
    %188 = vperm.xlu0 %187, %v46
    %v189 = vpop.permute.xlu0 %188
    %v191 = vperm.slane %v47, 7
    %v192 = vperm.slane %v48, 7
    %v193 = vmul.f32 %v185, %v191
    %v194 = vmul.f32 %v185, %v192
    %v195 = vmul.f32 %v189, %v191
    %v196 = vmul.f32 %v189, %v192
    %v197 = vadd.f32 %v179, %v193
    %v198 = vadd.f32 %v180, %v194
    %v199 = vadd.f32 %v181, %v195
    %v200 = vadd.f32 %v182, %v196
    %v201 = vand.u32 2147483647, %v197
    %vm202 = vcmp.le.f32.partialorder %v201, 0.7853982
    %vm203 = vcmp.lt.s32.totalorder %v197, 0
    %v204 = vand.u32 %v197, 2139095040
    %v205 = vshrl.u32 %v204, 23
    %v206 = vsub.s32 %v205, 127
    %v207 = vand.u32 2147483647, %v197
    %v208 = vand.u32 %v207, 8388607
    %v209 = vor.u32 %v208, 8388608
    %v210 = vsub.s32 0, %v209
    %v211 = vadd.s32 %v206, 1
    %vm212 = vcmp.gt.s32.totalorder %v211, 0
    %v213 = vsel %vm212, %v211, 0
    %v214 = vshrl.u32 %v213, 5
    %v215 = vand.u32 %v213, 31
    %v216 = vsub.s32 32, %v215
    %v217 = vshrl.u32 683565275, %v216
    %v218 = vshll.u32 683565275, %v215
    %v219 = vshrl.u32 2475754826, %v216
    %v220 = vor.u32 %v218, %v219
    %v221 = vshll.u32 2475754826, %v215
    %v222 = vshrl.u32 2131351028, %v216
    %v223 = vor.u32 %v221, %v222
    %v224 = vshll.u32 2131351028, %v215
    %v225 = vshrl.u32 2102212464, %v216
    %v226 = vor.u32 %v224, %v225
    %v227 = vshll.u32 2102212464, %v215
    %v228 = vshrl.u32 920167782, %v216
    %v229 = vor.u32 %v227, %v228
    %v230 = vshll.u32 920167782, %v215
    %v231 = vshrl.u32 1326507024, %v216
    %v232 = vor.u32 %v230, %v231
    %vm233 = vcmp.lt.s32.totalorder %v214, 1
    %vm234 = vcmp.lt.s32.totalorder %v214, 2
    %vm235 = vcmp.lt.s32.totalorder %v214, 3
    %vm236 = vcmp.lt.s32.totalorder %v214, 4
    %v237 = vsel %vm233, %v217, %v220
    %v238 = vsel %vm236, %v226, 2102212464
    %v239 = vsel %vm235, %v223, %v238
    %v240 = vsel %vm234, %v237, %v239
    %v241 = vsel %vm233, %v220, %v223
    %v242 = vsel %vm236, %v229, 920167782
    %v243 = vsel %vm235, %v226, %v242
    %v244 = vsel %vm234, %v241, %v243
    %v245 = vsel %vm233, %v223, %v226
    %v246 = vsel %vm236, %v232, 1326507024
    %v247 = vsel %vm235, %v229, %v246
    %v248 = vsel %vm234, %v245, %v247
    %v249 = vshll.u32 %v209, 8
    %v250 = vand.u32 %v249, 65535
    %v251 = vshrl.u32 %v249, 16
    %v252 = vand.u32 %v248, 65535
    %v253 = vshrl.u32 %v248, 16
    %v254 = vmul.u32 %v250, %v252
    %v255 = vmul.u32 %v250, %v253
    %v256 = vmul.u32 %v251, %v252
    %v257 = vmul.u32 %v251, %v253
    %v258 = vshll.u32 %v255, 16
    %v259 = vshrl.u32 %v255, 16
    %v260 = vshll.u32 %v256, 16
    %v261 = vshrl.u32 %v256, 16
    %vm262 = vc.u32 %v254, %v258
    %v263 = vsel %vm262, 1, 0
    %v264 = vadd.s32 %v254, %v258
    %v265 = vadd.s32 %v257, %v263
    %vm266 = vc.u32 %v264, %v260
    %v267 = vsel %vm266, 1, 0
    %v268 = vadd.s32 %v264, %v260
    %v269 = vadd.s32 %v265, %v267
    %v270 = vadd.s32 %v269, %v259
    %v271 = vadd.s32 %v270, %v261
    %v272 = vand.u32 %v249, 65535
    %v273 = vshrl.u32 %v249, 16
    %v274 = vand.u32 %v244, 65535
    %v275 = vshrl.u32 %v244, 16
    %v276 = vmul.u32 %v272, %v274
    %v277 = vmul.u32 %v272, %v275
    %v278 = vmul.u32 %v273, %v274
    %v279 = vmul.u32 %v273, %v275
    %v280 = vshll.u32 %v277, 16
    %v281 = vshrl.u32 %v277, 16
    %v282 = vshll.u32 %v278, 16
    %v283 = vshrl.u32 %v278, 16
    %vm284 = vc.u32 %v276, %v280
    %v285 = vsel %vm284, 1, 0
    %v286 = vadd.s32 %v276, %v280
    %v287 = vadd.s32 %v279, %v285
    %vm288 = vc.u32 %v286, %v282
    %v289 = vsel %vm288, 1, 0
    %v290 = vadd.s32 %v286, %v282
    %v291 = vadd.s32 %v287, %v289
    %v292 = vadd.s32 %v291, %v281
    %v293 = vadd.s32 %v292, %v283
    %v294 = vmul.u32 %v249, %v240
    %v295 = vadd.s32 %v271, %v290
    %vm296 = vc.u32 %v271, %v290
    %v297 = vadd.s32 %v293, 1
    %v298 = vsel %vm296, %v297, %v293
    %v299 = vadd.s32 %v294, %v298
    %v300 = vadd.s32 %v299, 536870912
    %v301 = vshrl.u32 %v300, 30
    %v302 = vshll.u32 %v301, 30
    %v303 = vsub.s32 %v299, %v302
    %vm304 = vcmp.lt.s32.totalorder %v303, 0
    %v305 = vsub.s32 0, %v303
    %v306 = vsel %vm304, %v305, %v303
    %v307 = vclz %v306
    %v308 = vsub.s32 %v307, 2
    %vm309 = vcmp.gt.s32.totalorder 0, %v308
    %v310 = vsel %vm309, 0, %v308
    %v311 = vsub.s32 32, %v310
    %v312 = vshll.u32 %v303, %v310
    %v313 = vshrl.u32 %v295, %v311
    %v314 = vor.u32 %v312, %v313
    %v315 = vsub.s32 4294967266, %v310
    %v316 = vadd.s32 %v315, 127
    %v317 = vshll.u32 %v316, 23
    %v318 = vor.u32 4788187, %v317
    %v319 = vand.u32 2147483647, %v318
    %v321 = vcvt.s32.f32 %v314
    %v322 = vmul.f32 %v321, %v319
    %v323 = vxor.u32 %v322, 2147483648
    %v324 = vsel %vm203, %v323, %v322
    %v325 = vsub.s32 4, %v301
    %v326 = vsel %vm203, %v325, %v301
    %v327 = vsel %vm202, %v197, %v324
    %v328 = vsel %vm202, 0, %v326
    %v329 = vmul.f32 %v327, %v327
    %v330 = vmul.f32 %v329, -0.001358992
    %v331 = vadd.f32 %v330, 0.041655596
    %v332 = vmul.f32 %v329, %v331
    %v333 = vadd.f32 %v332, -0.4999988
    %v334 = vmul.f32 %v329, %v333
    %v335 = vadd.f32 1.0, %v334
    %v336 = vmul.f32 %v327, %v327
    %v337 = vmul.f32 %v336, -0.00019511016
    %v338 = vadd.f32 %v337, 0.008332121
    %v339 = vmul.f32 %v336, %v338
    %v340 = vadd.f32 %v339, -0.16666654
    %v341 = vmul.f32 %v336, %v340
    %v342 = vadd.f32 %v341, 1.0
    %v343 = vmul.f32 %v342, %v327
    %vm344 = vweird.f32 %v197
    %v345 = vadd.s32 %v328, 3
    %v346 = vand.u32 %v345, 3
    %vm347 = vcmp.lt.s32.totalorder %v346, 2
    %vm348 = vcmp.eq.s32.totalorder %v346, 0
    %v349 = vxor.u32 %v343, 2147483648
    %v350 = vsel %vm348, %v335, %v349
    %vm351 = vcmp.eq.s32.totalorder %v346, 2
    %v352 = vxor.u32 %v335, 2147483648
    %v353 = vsel %vm351, %v352, %v343
    %v354 = vsel %vm347, %v350, %v353
    %v355 = vsel %vm344, nan, %v354
    %v356 = vand.u32 2147483647, %v198
    %vm357 = vcmp.le.f32.partialorder %v356, 0.7853982
    %vm358 = vcmp.lt.s32.totalorder %v198, 0
    %v359 = vand.u32 %v198, 2139095040
    %v360 = vshrl.u32 %v359, 23
    %v361 = vsub.s32 %v360, 127
    %v362 = vand.u32 2147483647, %v198
    %v363 = vand.u32 %v362, 8388607
    %v364 = vor.u32 %v363, 8388608
    %v365 = vsub.s32 0, %v364
    %v366 = vadd.s32 %v361, 1
    %vm367 = vcmp.gt.s32.totalorder %v366, 0
    %v368 = vsel %vm367, %v366, 0
    %v369 = vshrl.u32 %v368, 5
    %v370 = vand.u32 %v368, 31
    %v371 = vsub.s32 32, %v370
    %v372 = vshrl.u32 683565275, %v371
    %v373 = vshll.u32 683565275, %v370
    %v374 = vshrl.u32 2475754826, %v371
    %v375 = vor.u32 %v373, %v374
    %v376 = vshll.u32 2475754826, %v370
    %v377 = vshrl.u32 2131351028, %v371
    %v378 = vor.u32 %v376, %v377
    %v379 = vshll.u32 2131351028, %v370
    %v380 = vshrl.u32 2102212464, %v371
    %v381 = vor.u32 %v379, %v380
    %v382 = vshll.u32 2102212464, %v370
    %v383 = vshrl.u32 920167782, %v371
    %v384 = vor.u32 %v382, %v383
    %v385 = vshll.u32 920167782, %v370
    %v386 = vshrl.u32 1326507024, %v371
    %v387 = vor.u32 %v385, %v386
    %vm388 = vcmp.lt.s32.totalorder %v369, 1
    %vm389 = vcmp.lt.s32.totalorder %v369, 2
    %vm390 = vcmp.lt.s32.totalorder %v369, 3
    %vm391 = vcmp.lt.s32.totalorder %v369, 4
    %v392 = vsel %vm388, %v372, %v375
    %v393 = vsel %vm391, %v381, 2102212464
    %v394 = vsel %vm390, %v378, %v393
    %v395 = vsel %vm389, %v392, %v394
    %v396 = vsel %vm388, %v375, %v378
    %v397 = vsel %vm391, %v384, 920167782
    %v398 = vsel %vm390, %v381, %v397
    %v399 = vsel %vm389, %v396, %v398
    %v400 = vsel %vm388, %v378, %v381
    %v401 = vsel %vm391, %v387, 1326507024
    %v402 = vsel %vm390, %v384, %v401
    %v403 = vsel %vm389, %v400, %v402
    %v404 = vshll.u32 %v364, 8
    %v405 = vand.u32 %v404, 65535
    %v406 = vshrl.u32 %v404, 16
    %v407 = vand.u32 %v403, 65535
    %v408 = vshrl.u32 %v403, 16
    %v409 = vmul.u32 %v405, %v407
    %v410 = vmul.u32 %v405, %v408
    %v411 = vmul.u32 %v406, %v407
    %v412 = vmul.u32 %v406, %v408
    %v413 = vshll.u32 %v410, 16
    %v414 = vshrl.u32 %v410, 16
    %v415 = vshll.u32 %v411, 16
    %v416 = vshrl.u32 %v411, 16
    %vm417 = vc.u32 %v409, %v413
    %v418 = vsel %vm417, 1, 0
    %v419 = vadd.s32 %v409, %v413
    %v420 = vadd.s32 %v412, %v418
    %vm421 = vc.u32 %v419, %v415
    %v422 = vsel %vm421, 1, 0
    %v423 = vadd.s32 %v419, %v415
    %v424 = vadd.s32 %v420, %v422
    %v425 = vadd.s32 %v424, %v414
    %v426 = vadd.s32 %v425, %v416
    %v427 = vand.u32 %v404, 65535
    %v428 = vshrl.u32 %v404, 16
    %v429 = vand.u32 %v399, 65535
    %v430 = vshrl.u32 %v399, 16
    %v431 = vmul.u32 %v427, %v429
    %v432 = vmul.u32 %v427, %v430
    %v433 = vmul.u32 %v428, %v429
    %v434 = vmul.u32 %v428, %v430
    %v435 = vshll.u32 %v432, 16
    %v436 = vshrl.u32 %v432, 16
    %v437 = vshll.u32 %v433, 16
    %v438 = vshrl.u32 %v433, 16
    %vm439 = vc.u32 %v431, %v435
    %v440 = vsel %vm439, 1, 0
    %v441 = vadd.s32 %v431, %v435
    %v442 = vadd.s32 %v434, %v440
    %vm443 = vc.u32 %v441, %v437
    %v444 = vsel %vm443, 1, 0
    %v445 = vadd.s32 %v441, %v437
    %v446 = vadd.s32 %v442, %v444
    %v447 = vadd.s32 %v446, %v436
    %v448 = vadd.s32 %v447, %v438
    %v449 = vmul.u32 %v404, %v395
    %v450 = vadd.s32 %v426, %v445
    %vm451 = vc.u32 %v426, %v445
    %v452 = vadd.s32 %v448, 1
    %v453 = vsel %vm451, %v452, %v448
    %v454 = vadd.s32 %v449, %v453
    %v455 = vadd.s32 %v454, 536870912
    %v456 = vshrl.u32 %v455, 30
    %v457 = vshll.u32 %v456, 30
    %v458 = vsub.s32 %v454, %v457
    %vm459 = vcmp.lt.s32.totalorder %v458, 0
    %v460 = vsub.s32 0, %v458
    %v461 = vsel %vm459, %v460, %v458
    %v462 = vclz %v461
    %v463 = vsub.s32 %v462, 2
    %vm464 = vcmp.gt.s32.totalorder 0, %v463
    %v465 = vsel %vm464, 0, %v463
    %v466 = vsub.s32 32, %v465
    %v467 = vshll.u32 %v458, %v465
    %v468 = vshrl.u32 %v450, %v466
    %v469 = vor.u32 %v467, %v468
    %v470 = vsub.s32 4294967266, %v465
    %v471 = vadd.s32 %v470, 127
    %v472 = vshll.u32 %v471, 23
    %v473 = vor.u32 4788187, %v472
    %v474 = vand.u32 2147483647, %v473
    %v476 = vcvt.s32.f32 %v469
    %v477 = vmul.f32 %v476, %v474
    %v478 = vxor.u32 %v477, 2147483648
    %v479 = vsel %vm358, %v478, %v477
    %v480 = vsub.s32 4, %v456
    %v481 = vsel %vm358, %v480, %v456
    %v482 = vsel %vm357, %v198, %v479
    %v483 = vsel %vm357, 0, %v481
    %v484 = vmul.f32 %v482, %v482
    %v485 = vmul.f32 %v484, -0.001358992
    %v486 = vadd.f32 %v485, 0.041655596
    %v487 = vmul.f32 %v484, %v486
    %v488 = vadd.f32 %v487, -0.4999988
    %v489 = vmul.f32 %v484, %v488
    %v490 = vadd.f32 1.0, %v489
    %v491 = vmul.f32 %v482, %v482
    %v492 = vmul.f32 %v491, -0.00019511016
    %v493 = vadd.f32 %v492, 0.008332121
    %v494 = vmul.f32 %v491, %v493
    %v495 = vadd.f32 %v494, -0.16666654
    %v496 = vmul.f32 %v491, %v495
    %v497 = vadd.f32 %v496, 1.0
    %v498 = vmul.f32 %v497, %v482
    %vm499 = vweird.f32 %v198
    %v500 = vadd.s32 %v483, 3
    %v501 = vand.u32 %v500, 3
    %vm502 = vcmp.lt.s32.totalorder %v501, 2
    %vm503 = vcmp.eq.s32.totalorder %v501, 0
    %v504 = vxor.u32 %v498, 2147483648
    %v505 = vsel %vm503, %v490, %v504
    %vm506 = vcmp.eq.s32.totalorder %v501, 2
    %v507 = vxor.u32 %v490, 2147483648
    %v508 = vsel %vm506, %v507, %v498
    %v509 = vsel %vm502, %v505, %v508
    %v510 = vsel %vm499, nan, %v509
    %v511 = vand.u32 2147483647, %v199
    %vm512 = vcmp.le.f32.partialorder %v511, 0.7853982
    %vm513 = vcmp.lt.s32.totalorder %v199, 0
    %v514 = vand.u32 %v199, 2139095040
    %v515 = vshrl.u32 %v514, 23
    %v516 = vsub.s32 %v515, 127
    %v517 = vand.u32 2147483647, %v199
    %v518 = vand.u32 %v517, 8388607
    %v519 = vor.u32 %v518, 8388608
    %v520 = vsub.s32 0, %v519
    %v521 = vadd.s32 %v516, 1
    %vm522 = vcmp.gt.s32.totalorder %v521, 0
    %v523 = vsel %vm522, %v521, 0
    %v524 = vshrl.u32 %v523, 5
    %v525 = vand.u32 %v523, 31
    %v526 = vsub.s32 32, %v525
    %v527 = vshrl.u32 683565275, %v526
    %v528 = vshll.u32 683565275, %v525
    %v529 = vshrl.u32 2475754826, %v526
    %v530 = vor.u32 %v528, %v529
    %v531 = vshll.u32 2475754826, %v525
    %v532 = vshrl.u32 2131351028, %v526
    %v533 = vor.u32 %v531, %v532
    %v534 = vshll.u32 2131351028, %v525
    %v535 = vshrl.u32 2102212464, %v526
    %v536 = vor.u32 %v534, %v535
    %v537 = vshll.u32 2102212464, %v525
    %v538 = vshrl.u32 920167782, %v526
    %v539 = vor.u32 %v537, %v538
    %v540 = vshll.u32 920167782, %v525
    %v541 = vshrl.u32 1326507024, %v526
    %v542 = vor.u32 %v540, %v541
    %vm543 = vcmp.lt.s32.totalorder %v524, 1
    %vm544 = vcmp.lt.s32.totalorder %v524, 2
    %vm545 = vcmp.lt.s32.totalorder %v524, 3
    %vm546 = vcmp.lt.s32.totalorder %v524, 4
    %v547 = vsel %vm543, %v527, %v530
    %v548 = vsel %vm546, %v536, 2102212464
    %v549 = vsel %vm545, %v533, %v548
    %v550 = vsel %vm544, %v547, %v549
    %v551 = vsel %vm543, %v530, %v533
    %v552 = vsel %vm546, %v539, 920167782
    %v553 = vsel %vm545, %v536, %v552
    %v554 = vsel %vm544, %v551, %v553
    %v555 = vsel %vm543, %v533, %v536
    %v556 = vsel %vm546, %v542, 1326507024
    %v557 = vsel %vm545, %v539, %v556
    %v558 = vsel %vm544, %v555, %v557
    %v559 = vshll.u32 %v519, 8
    %v560 = vand.u32 %v559, 65535
    %v561 = vshrl.u32 %v559, 16
    %v562 = vand.u32 %v558, 65535
    %v563 = vshrl.u32 %v558, 16
    %v564 = vmul.u32 %v560, %v562
    %v565 = vmul.u32 %v560, %v563
    %v566 = vmul.u32 %v561, %v562
    %v567 = vmul.u32 %v561, %v563
    %v568 = vshll.u32 %v565, 16
    %v569 = vshrl.u32 %v565, 16
    %v570 = vshll.u32 %v566, 16
    %v571 = vshrl.u32 %v566, 16
    %vm572 = vc.u32 %v564, %v568
    %v573 = vsel %vm572, 1, 0
    %v574 = vadd.s32 %v564, %v568
    %v575 = vadd.s32 %v567, %v573
    %vm576 = vc.u32 %v574, %v570
    %v577 = vsel %vm576, 1, 0
    %v578 = vadd.s32 %v574, %v570
    %v579 = vadd.s32 %v575, %v577
    %v580 = vadd.s32 %v579, %v569
    %v581 = vadd.s32 %v580, %v571
    %v582 = vand.u32 %v559, 65535
    %v583 = vshrl.u32 %v559, 16
    %v584 = vand.u32 %v554, 65535
    %v585 = vshrl.u32 %v554, 16
    %v586 = vmul.u32 %v582, %v584
    %v587 = vmul.u32 %v582, %v585
    %v588 = vmul.u32 %v583, %v584
    %v589 = vmul.u32 %v583, %v585
    %v590 = vshll.u32 %v587, 16
    %v591 = vshrl.u32 %v587, 16
    %v592 = vshll.u32 %v588, 16
    %v593 = vshrl.u32 %v588, 16
    %vm594 = vc.u32 %v586, %v590
    %v595 = vsel %vm594, 1, 0
    %v596 = vadd.s32 %v586, %v590
    %v597 = vadd.s32 %v589, %v595
    %vm598 = vc.u32 %v596, %v592
    %v599 = vsel %vm598, 1, 0
    %v600 = vadd.s32 %v596, %v592
    %v601 = vadd.s32 %v597, %v599
    %v602 = vadd.s32 %v601, %v591
    %v603 = vadd.s32 %v602, %v593
    %v604 = vmul.u32 %v559, %v550
    %v605 = vadd.s32 %v581, %v600
    %vm606 = vc.u32 %v581, %v600
    %v607 = vadd.s32 %v603, 1
    %v608 = vsel %vm606, %v607, %v603
    %v609 = vadd.s32 %v604, %v608
    %v610 = vadd.s32 %v609, 536870912
    %v611 = vshrl.u32 %v610, 30
    %v612 = vshll.u32 %v611, 30
    %v613 = vsub.s32 %v609, %v612
    %vm614 = vcmp.lt.s32.totalorder %v613, 0
    %v615 = vsub.s32 0, %v613
    %v616 = vsel %vm614, %v615, %v613
    %v617 = vclz %v616
    %v618 = vsub.s32 %v617, 2
    %vm619 = vcmp.gt.s32.totalorder 0, %v618
    %v620 = vsel %vm619, 0, %v618
    %v621 = vsub.s32 32, %v620
    %v622 = vshll.u32 %v613, %v620
    %v623 = vshrl.u32 %v605, %v621
    %v624 = vor.u32 %v622, %v623
    %v625 = vsub.s32 4294967266, %v620
    %v626 = vadd.s32 %v625, 127
    %v627 = vshll.u32 %v626, 23
    %v628 = vor.u32 4788187, %v627
    %v629 = vand.u32 2147483647, %v628
    %v631 = vcvt.s32.f32 %v624
    %v632 = vmul.f32 %v631, %v629
    %v633 = vxor.u32 %v632, 2147483648
    %v634 = vsel %vm513, %v633, %v632
    %v635 = vsub.s32 4, %v611
    %v636 = vsel %vm513, %v635, %v611
    %v637 = vsel %vm512, %v199, %v634
    %v638 = vsel %vm512, 0, %v636
    %v639 = vmul.f32 %v637, %v637
    %v640 = vmul.f32 %v639, -0.001358992
    %v641 = vadd.f32 %v640, 0.041655596
    %v642 = vmul.f32 %v639, %v641
    %v643 = vadd.f32 %v642, -0.4999988
    %v644 = vmul.f32 %v639, %v643
    %v645 = vadd.f32 1.0, %v644
    %v646 = vmul.f32 %v637, %v637
    %v647 = vmul.f32 %v646, -0.00019511016
    %v648 = vadd.f32 %v647, 0.008332121
    %v649 = vmul.f32 %v646, %v648
    %v650 = vadd.f32 %v649, -0.16666654
    %v651 = vmul.f32 %v646, %v650
    %v652 = vadd.f32 %v651, 1.0
    %v653 = vmul.f32 %v652, %v637
    %vm654 = vweird.f32 %v199
    %v655 = vadd.s32 %v638, 3
    %v656 = vand.u32 %v655, 3
    %vm657 = vcmp.lt.s32.totalorder %v656, 2
    %vm658 = vcmp.eq.s32.totalorder %v656, 0
    %v659 = vxor.u32 %v653, 2147483648
    %v660 = vsel %vm658, %v645, %v659
    %vm661 = vcmp.eq.s32.totalorder %v656, 2
    %v662 = vxor.u32 %v645, 2147483648
    %v663 = vsel %vm661, %v662, %v653
    %v664 = vsel %vm657, %v660, %v663
    %v665 = vsel %vm654, nan, %v664
    %v666 = vand.u32 2147483647, %v200
    %vm667 = vcmp.le.f32.partialorder %v666, 0.7853982
    %vm668 = vcmp.lt.s32.totalorder %v200, 0
    %v669 = vand.u32 %v200, 2139095040
    %v670 = vshrl.u32 %v669, 23
    %v671 = vsub.s32 %v670, 127
    %v672 = vand.u32 2147483647, %v200
    %v673 = vand.u32 %v672, 8388607
    %v674 = vor.u32 %v673, 8388608
    %v675 = vsub.s32 0, %v674
    %v676 = vadd.s32 %v671, 1
    %vm677 = vcmp.gt.s32.totalorder %v676, 0
    %v678 = vsel %vm677, %v676, 0
    %v679 = vshrl.u32 %v678, 5
    %v680 = vand.u32 %v678, 31
    %v681 = vsub.s32 32, %v680
    %v682 = vshrl.u32 683565275, %v681
    %v683 = vshll.u32 683565275, %v680
    %v684 = vshrl.u32 2475754826, %v681
    %v685 = vor.u32 %v683, %v684
    %v686 = vshll.u32 2475754826, %v680
    %v687 = vshrl.u32 2131351028, %v681
    %v688 = vor.u32 %v686, %v687
    %v689 = vshll.u32 2131351028, %v680
    %v690 = vshrl.u32 2102212464, %v681
    %v691 = vor.u32 %v689, %v690
    %v692 = vshll.u32 2102212464, %v680
    %v693 = vshrl.u32 920167782, %v681
    %v694 = vor.u32 %v692, %v693
    %v695 = vshll.u32 920167782, %v680
    %v696 = vshrl.u32 1326507024, %v681
    %v697 = vor.u32 %v695, %v696
    %vm698 = vcmp.lt.s32.totalorder %v679, 1
    %vm699 = vcmp.lt.s32.totalorder %v679, 2
    %vm700 = vcmp.lt.s32.totalorder %v679, 3
    %vm701 = vcmp.lt.s32.totalorder %v679, 4
    %v702 = vsel %vm698, %v682, %v685
    %v703 = vsel %vm701, %v691, 2102212464
    %v704 = vsel %vm700, %v688, %v703
    %v705 = vsel %vm699, %v702, %v704
    %v706 = vsel %vm698, %v685, %v688
    %v707 = vsel %vm701, %v694, 920167782
    %v708 = vsel %vm700, %v691, %v707
    %v709 = vsel %vm699, %v706, %v708
    %v710 = vsel %vm698, %v688, %v691
    %v711 = vsel %vm701, %v697, 1326507024
    %v712 = vsel %vm700, %v694, %v711
    %v713 = vsel %vm699, %v710, %v712
    %v714 = vshll.u32 %v674, 8
    %v715 = vand.u32 %v714, 65535
    %v716 = vshrl.u32 %v714, 16
    %v717 = vand.u32 %v713, 65535
    %v718 = vshrl.u32 %v713, 16
    %v719 = vmul.u32 %v715, %v717
    %v720 = vmul.u32 %v715, %v718
    %v721 = vmul.u32 %v716, %v717
    %v722 = vmul.u32 %v716, %v718
    %v723 = vshll.u32 %v720, 16
    %v724 = vshrl.u32 %v720, 16
    %v725 = vshll.u32 %v721, 16
    %v726 = vshrl.u32 %v721, 16
    %vm727 = vc.u32 %v719, %v723
    %v728 = vsel %vm727, 1, 0
    %v729 = vadd.s32 %v719, %v723
    %v730 = vadd.s32 %v722, %v728
    %vm731 = vc.u32 %v729, %v725
    %v732 = vsel %vm731, 1, 0
    %v733 = vadd.s32 %v729, %v725
    %v734 = vadd.s32 %v730, %v732
    %v735 = vadd.s32 %v734, %v724
    %v736 = vadd.s32 %v735, %v726
    %v737 = vand.u32 %v714, 65535
    %v738 = vshrl.u32 %v714, 16
    %v739 = vand.u32 %v709, 65535
    %v740 = vshrl.u32 %v709, 16
    %v741 = vmul.u32 %v737, %v739
    %v742 = vmul.u32 %v737, %v740
    %v743 = vmul.u32 %v738, %v739
    %v744 = vmul.u32 %v738, %v740
    %v745 = vshll.u32 %v742, 16
    %v746 = vshrl.u32 %v742, 16
    %v747 = vshll.u32 %v743, 16
    %v748 = vshrl.u32 %v743, 16
    %vm749 = vc.u32 %v741, %v745
    %v750 = vsel %vm749, 1, 0
    %v751 = vadd.s32 %v741, %v745
    %v752 = vadd.s32 %v744, %v750
    %vm753 = vc.u32 %v751, %v747
    %v754 = vsel %vm753, 1, 0
    %v755 = vadd.s32 %v751, %v747
    %v756 = vadd.s32 %v752, %v754
    %v757 = vadd.s32 %v756, %v746
    %v758 = vadd.s32 %v757, %v748
    %v759 = vmul.u32 %v714, %v705
    %v760 = vadd.s32 %v736, %v755
    %vm761 = vc.u32 %v736, %v755
    %v762 = vadd.s32 %v758, 1
    %v763 = vsel %vm761, %v762, %v758
    %v764 = vadd.s32 %v759, %v763
    %v765 = vadd.s32 %v764, 536870912
    %v766 = vshrl.u32 %v765, 30
    %v767 = vshll.u32 %v766, 30
    %v768 = vsub.s32 %v764, %v767
    %vm769 = vcmp.lt.s32.totalorder %v768, 0
    %v770 = vsub.s32 0, %v768
    %v771 = vsel %vm769, %v770, %v768
    %v772 = vclz %v771
    %v773 = vsub.s32 %v772, 2
    %vm774 = vcmp.gt.s32.totalorder 0, %v773
    %v775 = vsel %vm774, 0, %v773
    %v776 = vsub.s32 32, %v775
    %v777 = vshll.u32 %v768, %v775
    %v778 = vshrl.u32 %v760, %v776
    %v779 = vor.u32 %v777, %v778
    %v780 = vsub.s32 4294967266, %v775
    %v781 = vadd.s32 %v780, 127
    %v782 = vshll.u32 %v781, 23
    %v783 = vor.u32 4788187, %v782
    %v784 = vand.u32 2147483647, %v783
    %v786 = vcvt.s32.f32 %v779
    %v787 = vmul.f32 %v786, %v784
    %v788 = vxor.u32 %v787, 2147483648
    %v789 = vsel %vm668, %v788, %v787
    %v790 = vsub.s32 4, %v766
    %v791 = vsel %vm668, %v790, %v766
    %v792 = vsel %vm667, %v200, %v789
    %v793 = vsel %vm667, 0, %v791
    %v794 = vmul.f32 %v792, %v792
    %v795 = vmul.f32 %v794, -0.001358992
    %v796 = vadd.f32 %v795, 0.041655596
    %v797 = vmul.f32 %v794, %v796
    %v798 = vadd.f32 %v797, -0.4999988
    %v799 = vmul.f32 %v794, %v798
    %v800 = vadd.f32 1.0, %v799
    %v801 = vmul.f32 %v792, %v792
    %v802 = vmul.f32 %v801, -0.00019511016
    %v803 = vadd.f32 %v802, 0.008332121
    %v804 = vmul.f32 %v801, %v803
    %v805 = vadd.f32 %v804, -0.16666654
    %v806 = vmul.f32 %v801, %v805
    %v807 = vadd.f32 %v806, 1.0
    %v808 = vmul.f32 %v807, %v792
    %vm809 = vweird.f32 %v200
    %v810 = vadd.s32 %v793, 3
    %v811 = vand.u32 %v810, 3
    %vm812 = vcmp.lt.s32.totalorder %v811, 2
    %vm813 = vcmp.eq.s32.totalorder %v811, 0
    %v814 = vxor.u32 %v808, 2147483648
    %v815 = vsel %vm813, %v800, %v814
    %vm816 = vcmp.eq.s32.totalorder %v811, 2
    %v817 = vxor.u32 %v800, 2147483648
    %v818 = vsel %vm816, %v817, %v808
    %v819 = vsel %vm812, %v815, %v818
    %v820 = vsel %vm809, nan, %v819
    %821 = vst [vmem:[#allocation7] sm:$0xff] %v355
    %vm822 = vcmask 261120
    %823 = vst.msk [vmem:[#allocation7 + $0x8] sm:$0xff] %vm822, %v510
    %824 = vst [vmem:[#allocation7 + $0x10] sm:$0xff] %v665
    %825 = vst.msk [vmem:[#allocation7 + $0x18] sm:$0xff] %vm822, %v820
    %826 = vrot.lane.b32.xlu0 %v45, 32
    %v827 = vpop.permute.xlu0 %826
    %828 = vrot.lane.b32.xlu0 %v46, 32
    %v829 = vpop.permute.xlu0 %828
    %vm832 = vcmask 326912
    %833 = vst.msk [vmem:[#allocation7 + $0x8] sm:$0xff] %vm832, %v827
    %834 = vst.msk [vmem:[#allocation7 + $0x18] sm:$0xff] %vm832, %v829
    // Predicated region
    $region22: #{pose_embedding.1} parent=1 // pred_check
      _
    $region23: #{pose_embedding.1} parent=1 // pred_check_branch
      %836 = sbr.rel (0) target = $region25
    $region24: #{pose_embedding.1} parent=1 // pred_region
      %838 = vsyncadd [#allocation4], 0
      %s839 = sshll.u32 [#allocation7], 4
      %s840 = int_to_ptr.vmem [resolvable:$true] %s839
      %s841 = sshll.u32 %s3, 4
      %s842 = int_to_ptr.hbm [resolvable:$true] %s841
      %847 = dma.vmem_to_hbm [thread:$0]  %s840, 512, %s842, [#allocation4], 256, 256, 16
    $region25: #{pose_embedding.1} parent=1 // pred_fallthru
      _
    // Predicated region
    $region26: #{pose_embedding.1} parent=1 // pred_check
      _
    $region27: #{pose_embedding.1} parent=1 // pred_check_branch
      %849 = sbr.rel (0) target = $region29
    $region28: #{pose_embedding.1} parent=1 // pred_region
      %851 = dma.done [#allocation4], 512
    $region29: #{pose_embedding.1} parent=1 // pred_fallthru
      _
    %852 = vsyncpa [#allocation3], 1
    %853 = vsyncpa [#allocation6], 1
    %854 = vsyncpa [#allocation4], 1

</llo_original>
